<compile_context>
chip_gen: v7x
topology: tpu7x:2x2x1
jax: 0.10.0
libtpu: 0.0.40
codegen_flags: <defaults>
</compile_context>

<pallas_src>
import functools

import jax
import jax.numpy as jnp
from jax.experimental import pallas as pl
from jax.experimental.pallas import tpu as pltpu

H1 = 128          # hidden-1 width
HP = 128          # padded hidden-2 / padded output width (lane-dense)


def _round_up(v, m):
    return ((v + m - 1) // m) * m


def mlp_kernel(x_ref, w1_ref, wslab_ref, bias_ref, o_ref):
    x = x_ref[...]

    # layer_1 + ReLU (BN1 folded into layer_2 weights).
    h1 = jnp.dot(x, w1_ref[...], preferred_element_type=jnp.float32) + bias_ref[0:1, :]
    h1 = jnp.maximum(h1, 0.0)

    # layer_2 + ReLU (BN1-folded weights, zero-padded to 128 output lanes;
    # padded lanes stay exactly 0 after ReLU, BN2 folded into layer_out).
    h2 = jnp.dot(h1, wslab_ref[0:H1, :], preferred_element_type=jnp.float32) + bias_ref[1:2, :]
    h2 = jnp.maximum(h2, 0.0)

    # layer_out (BN2-folded weights, zero-padded rows/cols -> full 128-lane store).
    o_ref[...] = (jnp.dot(h2, wslab_ref[H1:H1 + HP, :],
                          preferred_element_type=jnp.float32)
                  + bias_ref[2:3, :])


@functools.partial(jax.jit, static_argnames=("output_size", "tm"))
def nn_model_forward(x, packed_params, *, output_size, tm=2048):
    """x: [batch, input_size] float32. Returns logits [batch, output_size]."""
    assert output_size <= HP, "output_size must be <= 128 (lane padding assumption)"
    w1, wslab, biases = packed_params
    B, F = x.shape

    # Batch tiling (no pad pass; ragged last block handled by Pallas masking):
    #   * tiny B          -> one (possibly ragged) block, minimal latency
    #   * mid-size B      -> exactly >= 2 blocks so both v7x TCs get work
    #   * large B         -> fixed large tile tm (well under scoped VMEM)
    if B < 512:
        TM = max(8, _round_up(B, 8))
    elif B <= 2 * tm:
        TM = _round_up(pl.cdiv(B, 2), 8)
    else:
        TM = tm
    grid = (pl.cdiv(B, TM),)
    Bp = grid[0] * TM

    flops = int(2 * Bp * (F * H1 + H1 * HP + HP * HP))
    bytes_accessed = int(4 * (x.size + w1.size + wslab.size + biases.size + B * HP))

    out = pl.pallas_call(
        mlp_kernel,
        out_shape=jax.ShapeDtypeStruct((B, HP), jnp.float32),
        grid_spec=pltpu.PrefetchScalarGridSpec(
            num_scalar_prefetch=0,
            grid=grid,
            in_specs=[
                pl.BlockSpec((TM, F), lambda i: (i, 0)),          # x tile (ragged last block)
                pl.BlockSpec((F, H1), lambda i: (0, 0)),          # w1 (resident)
                pl.BlockSpec((H1 + HP, HP), lambda i: (0, 0)),    # w2|w3 slab (resident)
                pl.BlockSpec((3, HP), lambda i: (0, 0)),          # bias slab (resident)
            ],
            out_specs=pl.BlockSpec((TM, HP), lambda i: (i, 0)),
        ),
        compiler_params=pltpu.CompilerParams(
            dimension_semantics=("parallel",)),                   # v7x: shard batch over 2 TCs
        cost_estimate=pl.CostEstimate(
            flops=flops, transcendentals=0, bytes_accessed=bytes_accessed),
    )(x, w1, wslab, biases)

    return out[:, :output_size]


def init_params(key, input_size, output_size):
    """PyTorch-default-style init, then eval-mode BN folding + lane padding."""
    assert output_size <= HP, "output_size must be <= 128"

    def linear(k, fan_in, fan_out):
        kw, kb = jax.random.split(k)
        bound = 1.0 / jnp.sqrt(fan_in)
        w = jax.random.uniform(kw, (fan_in, fan_out), jnp.float32, -bound, bound)
        b = jax.random.uniform(kb, (1, fan_out), jnp.float32, -bound, bound)
        return w, b

    k1, k2, k3 = jax.random.split(key, 3)
    w1, b1 = linear(k1, input_size, 128)
    w2, b2 = linear(k2, 128, 64)
    w3, b3 = linear(k3, 64, output_size)

    eps = 1e-5
    # BatchNorm1d init: gamma=1, beta=0, running_mean=0, running_var=1.
    def bn_fold(n):
        gamma = jnp.ones((1, n), jnp.float32)
        beta = jnp.zeros((1, n), jnp.float32)
        mean = jnp.zeros((1, n), jnp.float32)
        var = jnp.ones((1, n), jnp.float32)
        scale = gamma / jnp.sqrt(var + eps)
        shift = beta - mean * scale
        return scale, shift

    s1, t1 = bn_fold(128)
    s2, t2 = bn_fold(64)

    # Fold BN1 into layer_2:  (h1*s1 + t1) @ w2 + b2  ==  h1 @ (s1.T*w2) + (t1@w2 + b2)
    w2f = w2 * s1.reshape(128, 1)
    b2f = b2 + t1 @ w2
    # Fold BN2 into layer_out.
    w3f = w3 * s2.reshape(64, 1)
    b3f = b3 + t2 @ w3

    # Zero-pad to lane-dense 128-wide tiles (padded lanes carry exact zeros).
    w2p = jnp.zeros((H1, HP), jnp.float32).at[:, :64].set(w2f)
    b2p = jnp.zeros((1, HP), jnp.float32).at[:, :64].set(b2f)
    w3p = jnp.zeros((HP, HP), jnp.float32).at[:64, :output_size].set(w3f)
    b3p = jnp.zeros((1, HP), jnp.float32).at[:, :output_size].set(b3f)

    wslab = jnp.concatenate([w2p, w3p], axis=0)          # (256, 128)
    biases = jnp.concatenate([b1, b2p, b3p], axis=0)     # (3, 128)

    packed = (w1, wslab, biases)
    raw = (w1, b1, w2, b2, w3, b3, s1, t1, s2, t2)
    return packed, raw


def _reference(x, raw):
    # Plain JAX, un-folded eval-mode math (Linear -> ReLU -> BN -> Dropout(id)).
    (w1, b1, w2, b2, w3, b3, s1, t1, s2, t2) = raw
    h1 = jnp.maximum(x @ w1 + b1, 0.0) * s1 + t1
    h2 = jnp.maximum(h1 @ w2 + b2, 0.0) * s2 + t2
    return h2 @ w3 + b3


if __name__ == "__main__":
    INPUT_SIZE, OUTPUT_SIZE = 32, 10

    key = jax.random.PRNGKey(0)
    k_params, k_x1, k_x2 = jax.random.split(key, 3)
    packed, raw = init_params(k_params, INPUT_SIZE, OUTPUT_SIZE)

    # Small-batch path (single block).
    B1 = 32
    x1 = jax.random.normal(k_x1, (B1, INPUT_SIZE), jnp.float32)
    out1 = nn_model_forward(x1, packed, output_size=OUTPUT_SIZE)
    jax.block_until_ready(out1)
    assert out1.shape == (B1, OUTPUT_SIZE)
    assert jnp.allclose(out1, _reference(x1, raw), atol=1e-4, rtol=1e-4)

    # Mid-size batch exercising the ragged, multi-step grid (2 blocks, last partial).
    B2 = 600
    x2 = jax.random.normal(k_x2, (B2, INPUT_SIZE), jnp.float32)
    out2 = nn_model_forward(x2, packed, output_size=OUTPUT_SIZE)
    jax.block_until_ready(out2)
    assert out2.shape == (B2, OUTPUT_SIZE)
    assert jnp.allclose(out2, _reference(x2, raw), atol=1e-4, rtol=1e-4)

    print("KERNEL_OK")
</pallas_src>

<mosaic_0001>
module attributes {stable_mosaic.version = 11 : i64} {
  func.func @mlp_kernel(%arg0: i32, %arg1: memref<32x32xf32, #tpu.memory_space<vmem>>, %arg2: memref<32x128xf32, #tpu.memory_space<vmem>>, %arg3: memref<256x128xf32, #tpu.memory_space<vmem>>, %arg4: memref<3x128xf32, #tpu.memory_space<vmem>>, %arg5: memref<32x128xf32, #tpu.memory_space<vmem>>) attributes {dimension_semantics = [#tpu.dimension_semantics<parallel>], iteration_bounds = array<i64: 1>, scalar_prefetch = 0 : i64, scratch_operands = 0 : i64, tpu.core_type = #tpu.core_type<tc>, window_params = [{transform_indices = @transform_0, window_bounds = array<i64: 32, 32>}, {pipeline_mode = #tpu.pipeline_mode<synchronous>, transform_indices = @transform_1, window_bounds = array<i64: 32, 128>}, {pipeline_mode = #tpu.pipeline_mode<synchronous>, transform_indices = @transform_2, window_bounds = array<i64: 256, 128>}, {pipeline_mode = #tpu.pipeline_mode<synchronous>, transform_indices = @transform_3, window_bounds = array<i64: 3, 128>}, {transform_indices = @transform_4, window_bounds = array<i64: 32, 128>}]} {
    %c0 = arith.constant 0 : index
    %c0_0 = arith.constant 0 : index
    %0 = vector.load %arg1[%c0, %c0_0] : memref<32x32xf32, #tpu.memory_space<vmem>>, vector<32x32xf32>
    %c0_1 = arith.constant 0 : index
    %c0_2 = arith.constant 0 : index
    %1 = vector.load %arg2[%c0_1, %c0_2] : memref<32x128xf32, #tpu.memory_space<vmem>>, vector<32x128xf32>
    %cst = arith.constant dense<0.000000e+00> : vector<32x128xf32>
    %2 = tpu.matmul %0, %1, %cst {dimension_numbers = #tpu.dot_dimension_numbers<[1], [0], [0], [1], [0, 0, 1, 1], [], []>} : vector<32x32xf32>, vector<32x128xf32>, vector<32x128xf32> -> vector<32x128xf32>
    %c0_3 = arith.constant 0 : index
    %c0_4 = arith.constant 0 : index
    %3 = vector.load %arg4[%c0_3, %c0_4] : memref<3x128xf32, #tpu.memory_space<vmem>>, vector<1x128xf32>
    %4 = vector.broadcast %3 : vector<1x128xf32> to vector<32x128xf32>
    %5 = arith.addf %2, %4 : vector<32x128xf32>
    %cst_5 = arith.constant 0.000000e+00 : f32
    %6 = vector.broadcast %cst_5 : f32 to vector<32x128xf32>
    %7 = arith.maximumf %5, %6 : vector<32x128xf32>
    %c0_6 = arith.constant 0 : index
    %c0_7 = arith.constant 0 : index
    %8 = vector.load %arg3[%c0_6, %c0_7] : memref<256x128xf32, #tpu.memory_space<vmem>>, vector<128x128xf32>
    %cst_8 = arith.constant dense<0.000000e+00> : vector<32x128xf32>
    %9 = tpu.matmul %7, %8, %cst_8 {dimension_numbers = #tpu.dot_dimension_numbers<[1], [0], [0], [1], [0, 0, 1, 1], [], []>} : vector<32x128xf32>, vector<128x128xf32>, vector<32x128xf32> -> vector<32x128xf32>
    %c1 = arith.constant 1 : index
    %c0_9 = arith.constant 0 : index
    %10 = vector.load %arg4[%c1, %c0_9] : memref<3x128xf32, #tpu.memory_space<vmem>>, vector<1x128xf32>
    %11 = vector.broadcast %10 : vector<1x128xf32> to vector<32x128xf32>
    %12 = arith.addf %9, %11 : vector<32x128xf32>
    %cst_10 = arith.constant 0.000000e+00 : f32
    %13 = vector.broadcast %cst_10 : f32 to vector<32x128xf32>
    %14 = arith.maximumf %12, %13 : vector<32x128xf32>
    %c128 = arith.constant 128 : index
    %c0_11 = arith.constant 0 : index
    %15 = vector.load %arg3[%c128, %c0_11] : memref<256x128xf32, #tpu.memory_space<vmem>>, vector<128x128xf32>
    %cst_12 = arith.constant dense<0.000000e+00> : vector<32x128xf32>
    %16 = tpu.matmul %14, %15, %cst_12 {dimension_numbers = #tpu.dot_dimension_numbers<[1], [0], [0], [1], [0, 0, 1, 1], [], []>} : vector<32x128xf32>, vector<128x128xf32>, vector<32x128xf32> -> vector<32x128xf32>
    %c2 = arith.constant 2 : index
    %c0_13 = arith.constant 0 : index
    %17 = vector.load %arg4[%c2, %c0_13] : memref<3x128xf32, #tpu.memory_space<vmem>>, vector<1x128xf32>
    %18 = vector.broadcast %17 : vector<1x128xf32> to vector<32x128xf32>
    %19 = arith.addf %16, %18 : vector<32x128xf32>
    %c0_14 = arith.constant 0 : index
    %c0_15 = arith.constant 0 : index
    %20 = vector.load %arg5[%c0_14, %c0_15] : memref<32x128xf32, #tpu.memory_space<vmem>>, vector<32x128xf32>
    tpu.vector_store %arg5[%c0_14, %c0_15], %19 {strides = array<i32>} : memref<32x128xf32, #tpu.memory_space<vmem>>, vector<32x128xf32>,
    return
  }
  func.func @transform_0(%arg0: i32) -> (i32, i32) {
    %c0_i32 = arith.constant 0 : i32
    %c0_i32_0 = arith.constant 0 : i32
    return %arg0, %c0_i32 : i32, i32
  }
  func.func @transform_1(%arg0: i32) -> (i32, i32) {
    %c0_i32 = arith.constant 0 : i32
    %c0_i32_0 = arith.constant 0 : i32
    %c0_i32_1 = arith.constant 0 : i32
    return %c0_i32, %c0_i32_0 : i32, i32
  }
  func.func @transform_2(%arg0: i32) -> (i32, i32) {
    %c0_i32 = arith.constant 0 : i32
    %c0_i32_0 = arith.constant 0 : i32
    %c0_i32_1 = arith.constant 0 : i32
    return %c0_i32, %c0_i32_0 : i32, i32
  }
  func.func @transform_3(%arg0: i32) -> (i32, i32) {
    %c0_i32 = arith.constant 0 : i32
    %c0_i32_0 = arith.constant 0 : i32
    %c0_i32_1 = arith.constant 0 : i32
    return %c0_i32, %c0_i32_0 : i32, i32
  }
  func.func @transform_4(%arg0: i32) -> (i32, i32) {
    %c0_i32 = arith.constant 0 : i32
    %c0_i32_0 = arith.constant 0 : i32
    return %arg0, %c0_i32 : i32, i32
  }
}

</mosaic_0001>

<llo_original>
// kernel: nn_model_forward.1
$region0: #{nn_model_forward.1}
  #allocation0 [shape = 'u32[]', space=smem, size = 0x4, offset = 0x4, fixed_abs, tag = 'smem constant byte address 0x4 - core index']
  #allocation1 [shape = 'u32[144,128]{1,0:T(1,128)}', space=vmem, size = 0x12000, scoped, tag = 'internal scratch']
  %s0 = inlined_call_operand.hbm [shape: f32[32,32], index: 0, kind: input, shape index: {}]
  %s1 = inlined_call_operand.hbm [shape: f32[32,128], index: 1, kind: input, shape index: {}]
  %s2 = inlined_call_operand.hbm [shape: f32[256,128], index: 2, kind: input, shape index: {}]
  %s3 = inlined_call_operand.vmem [shape: f32[3,128], index: 3, kind: input, shape index: {}]
  %s4 = inlined_call_operand.vmem [shape: f32[32,128], index: 4, kind: output, shape index: {}]
  %s5 = sld [smem:[#allocation0]]
  $region38: #{nn_model_forward.1} parent=0
    _
  %s7 = ssub.s32 1, %s5
  %s8 = scalar_select 0, %s7, %s5
  $region1: #{nn_model_forward.1} parent=0
    #allocation2 [shape = 'u8[16384]{0}', space=vmem, size = 0x4000, scoped, tag = 'input window, operand 0, single buffered']
    #allocation3 [shape = 's32[1]{0}', space=sflag, size = 0x4, scoped, tag = 'scoped memory for nn_model_forward.1']
    #allocation4 [shape = 'u8[16384]{0}', space=vmem, size = 0x4000, scoped, tag = 'input window, operand 1, single buffered']
    #allocation5 [shape = 's32[1]{0}', space=sflag, size = 0x4, scoped, tag = 'scoped memory for nn_model_forward.1']
    #allocation6 [shape = 'u8[131072]{0}', space=vmem, size = 0x20000, scoped, tag = 'input window, operand 2, single buffered']
    %9 = vsyncpa [#allocation3], 0
    %10 = vsyncpa [#allocation5], 0
    // Predicated region
    $region2: #{nn_model_forward.1} parent=1 // pred_check
      _
    $region3: #{nn_model_forward.1} parent=1 // pred_check_branch
      %12 = sbr.rel (0) target = $region5
    $region4: #{nn_model_forward.1} parent=1 // pred_region
      %s14 = ssub.s32 512, 512
      %15 = vsyncadd [#allocation3], %s14
      %s16 = sshll.u32 [#allocation2], 4
      %s17 = int_to_ptr.vmem [resolvable:$true] %s16
      %22 = dma.hbm_to_vmem [thread:$0]  %s0, 512, %s17, [#allocation3], 128, 128, 8
    $region5: #{nn_model_forward.1} parent=1 // pred_fallthru
      _
    // Predicated region
    $region6: #{nn_model_forward.1} parent=1 // pred_check
      _
    $region7: #{nn_model_forward.1} parent=1 // pred_check_branch
      %24 = sbr.rel (0) target = $region9
    $region8: #{nn_model_forward.1} parent=1 // pred_region
      %s26 = ssub.s32 512, 512
      %27 = vsyncadd [#allocation5], %s26
      %s28 = sshll.u32 [#allocation4], 4
      %s29 = int_to_ptr.vmem [resolvable:$true] %s28
      %34 = dma.hbm_to_vmem [thread:$0]  %s1, 512, %s29, [#allocation5], 128, 128, 8
    $region9: #{nn_model_forward.1} parent=1 // pred_fallthru
      _
    // Predicated region
    $region10: #{nn_model_forward.1} parent=1 // pred_check
      _
    $region11: #{nn_model_forward.1} parent=1 // pred_check_branch
      %36 = sbr.rel (0) target = $region13
    $region12: #{nn_model_forward.1} parent=1 // pred_region
      %s38 = ssub.s32 4096, 4096
      %39 = vsyncadd [#allocation5], %s38
      %s40 = sshll.u32 [#allocation6], 4
      %s41 = int_to_ptr.vmem [resolvable:$true] %s40
      %46 = dma.hbm_to_vmem [thread:$0]  %s2, 4096, %s41, [#allocation5], 128, 128, 8
    $region13: #{nn_model_forward.1} parent=1 // pred_fallthru
      _
    // Predicated region
    $region14: #{nn_model_forward.1} parent=1 // pred_check
      _
    $region15: #{nn_model_forward.1} parent=1 // pred_check_branch
      %48 = sbr.rel (0) target = $region17
    $region16: #{nn_model_forward.1} parent=1 // pred_region
      _
    $region17: #{nn_model_forward.1} parent=1 // pred_fallthru
      _
    // Predicated region
    $region18: #{nn_model_forward.1} parent=1 // pred_check
      _
    $region19: #{nn_model_forward.1} parent=1 // pred_check_branch
      %50 = sbr.rel (0) target = $region21
    $region20: #{nn_model_forward.1} parent=1 // pred_region
      %51 = dma.done [#allocation3], 512
    $region21: #{nn_model_forward.1} parent=1 // pred_fallthru
      _
    // Predicated region
    $region22: #{nn_model_forward.1} parent=1 // pred_check
      _
    $region23: #{nn_model_forward.1} parent=1 // pred_check_branch
      %53 = sbr.rel (0) target = $region25
    $region24: #{nn_model_forward.1} parent=1 // pred_region
      %54 = dma.done [#allocation5], 512
    $region25: #{nn_model_forward.1} parent=1 // pred_fallthru
      _
    // Predicated region
    $region26: #{nn_model_forward.1} parent=1 // pred_check
      _
    $region27: #{nn_model_forward.1} parent=1 // pred_check_branch
      %56 = sbr.rel (0) target = $region29
    $region28: #{nn_model_forward.1} parent=1 // pred_region
      %57 = dma.done [#allocation5], 4096
    $region29: #{nn_model_forward.1} parent=1 // pred_fallthru
      _
    %v58 = vld [vmem:[#allocation2] sm:$0xff]
    %v59 = vld [vmem:[#allocation2 + $0x8] sm:$0xff]
    %v60 = vld [vmem:[#allocation2 + $0x10] sm:$0xff]
    %v61 = vld [vmem:[#allocation2 + $0x18] sm:$0xff]
    %v62 = vld [vmem:[#allocation4] sm:$0xff]
    %v63 = vld [vmem:[#allocation4 + $0x8] sm:$0xff]
    %v64 = vld [vmem:[#allocation4 + $0x10] sm:$0xff]
    %v65 = vld [vmem:[#allocation4 + $0x18] sm:$0xff]
    %v66 = vld [vmem:[%s3] sm:$0x1]
    %v67 = vlaneseq
    %v68 = vshrl.u32 %v67, 7
    %v69 = vsub.s32 0, %v68
    %v70 = vrot.slane %v66, %v69
    %vm71 = vcmask 261120
    %v73 = vsel %vm71, %v58, 0
    %v76 = vsel %vm71, %v59, 0
    %v79 = vsel %vm71, %v60, 0
    %v82 = vsel %vm71, %v61, 0
    %84 = vmatprep.subr.mxu0 0.0
    %85 = vmatpush1.msra.mxu0 %v62
    %86 = vmatprep.subr.mxu0 0.0
    %87 = vmatpush1.msra.mxu0 %v63
    %88 = vmatprep.subr.mxu0 0.0
    %89 = vmatpush1.msra.mxu0 %v64
    %90 = vmatprep.subr.mxu0 0.0
    %91 = vmatpush1.msra.mxu0 %v65
    %92 = vmatprep.subr.mxu0 0.0
    %93 = vmatpush1.msra.mxu0 0.0
    %94 = vmatprep.subr.mxu0 0.0
    %95 = vmatpush1.msra.mxu0 0.0
    %96 = vmatprep.subr.mxu0 0.0
    %97 = vmatpush1.msra.mxu0 0.0
    %98 = vmatprep.subr.mxu0 0.0
    %99 = vmatpush1.msra.mxu0 0.0
    %100 = vmatprep.subr.mxu0 0.0
    %101 = vmatpush1.msra.mxu0 0.0
    %102 = vmatprep.subr.mxu0 0.0
    %103 = vmatpush1.msra.mxu0 0.0
    %104 = vmatprep.subr.mxu0 0.0
    %105 = vmatpush1.msra.mxu0 0.0
    %106 = vmatprep.subr.mxu0 0.0
    %107 = vmatpush1.msra.mxu0 0.0
    %108 = vmatprep.subr.mxu0 0.0
    %109 = vmatpush1.msra.mxu0 0.0
    %110 = vmatprep.subr.mxu0 0.0
    %111 = vmatpush1.msra.mxu0 0.0
    %112 = vmatprep.subr.mxu0 0.0
    %113 = vmatpush1.msra.mxu0 0.0
    %114 = vmatprep.subr.mxu0 0.0
    %115 = vmatpush1.msra.mxu0 0.0
    %116 = vmatprep.subr.mxu0 0.0
    %117 = vmatpush1.msra.mxu0 0.0
    %118 = vmatprep.subr.mxu0 0.0
    %119 = vmatpush1.msra.mxu0 0.0
    %120 = vmatprep.subr.mxu0 0.0
    %121 = vmatpush1.msra.mxu0 0.0
    %122 = vmatprep.subr.mxu0 0.0
    %123 = vmatpush1.msra.mxu0 0.0
    %124 = vmatprep.subr.mxu0 0.0
    %125 = vmatpush1.msra.mxu0 0.0
    %126 = vmatprep.subr.mxu0 0.0
    %127 = vmatpush1.msra.mxu0 0.0
    %128 = vmatprep.subr.mxu0 0.0
    %129 = vmatpush1.msra.mxu0 0.0
    %130 = vmatprep.subr.mxu0 0.0
    %131 = vmatpush1.msra.mxu0 0.0
    %132 = vmatprep.subr.mxu0 0.0
    %133 = vmatpush1.msra.mxu0 0.0
    %134 = vmatprep.subr.mxu0 0.0
    %135 = vmatpush1.msra.mxu0 0.0
    %136 = vmatprep.subr.mxu0 0.0
    %137 = vmatpush1.msra.mxu0 0.0
    %138 = vmatprep.subr.mxu0 0.0
    %139 = vmatpush1.msra.mxu0 0.0
    %140 = vmatprep.subr.mxu0 0.0
    %141 = vmatpush1.msra.mxu0 0.0
    %142 = vmatprep.subr.mxu0 0.0
    %143 = vmatpush1.msra.mxu0 0.0
    %144 = vmatprep.subr.mxu0 0.0
    %145 = vmatpush1.msra.mxu0 0.0
    %146 = vmatprep.subr.mxu0 0.0
    %147 = vmatpush1.msra.mxu0 0.0
    %148 = vmatprep.mubr.f32.mxu0 0.0
    %149 = vmatmul.mubr.f32.gmra.mrb[0].mxu0 %v73
    %v150 = vpop.f32.mrb[0].mxu0
    %v151 = vadd.f32 %v70, %v150
    %v152 = vpop.f32.mrb[0].mxu0
    %153 = vmatprep.mubr.f32.mxu0 0.0
    %154 = vmatmul.mubr.f32.gmra.mrb[0].mxu0 %v76
    %v155 = vpop.f32.mrb[0].mxu0
    %v156 = vadd.f32 %v70, %v155
    %v157 = vpop.f32.mrb[0].mxu0
    %158 = vmatprep.mubr.f32.mxu0 0.0
    %159 = vmatmul.mubr.f32.gmra.mrb[0].mxu0 %v79
    %v160 = vpop.f32.mrb[0].mxu0
    %v161 = vadd.f32 %v70, %v160
    %v162 = vpop.f32.mrb[0].mxu0
    %163 = vmatprep.mubr.f32.mxu0 0.0
    %164 = vmatmul.mubr.f32.gmra.mrb[0].mxu0 %v82
    %v165 = vpop.f32.mrb[0].mxu0
    %v166 = vadd.f32 %v70, %v165
    %v167 = vpop.f32.mrb[0].mxu0
    %168 = vdwg.mxu0
    %v169 = vmax.f32 %v151, 0.0
    %v170 = vmax.f32 %v156, 0.0
    %v171 = vmax.f32 %v161, 0.0
    %v172 = vmax.f32 %v166, 0.0
    %v173 = vld [vmem:[#allocation6] sm:$0xff]
    %v174 = vld [vmem:[#allocation6 + $0x8] sm:$0xff]
    %v175 = vld [vmem:[#allocation6 + $0x10] sm:$0xff]
    %v176 = vld [vmem:[#allocation6 + $0x18] sm:$0xff]
    %v177 = vld [vmem:[#allocation6 + $0x20] sm:$0xff]
    %v178 = vld [vmem:[#allocation6 + $0x28] sm:$0xff]
    %v179 = vld [vmem:[#allocation6 + $0x30] sm:$0xff]
    %v180 = vld [vmem:[#allocation6 + $0x38] sm:$0xff]
    %v181 = vld [vmem:[#allocation6 + $0x40] sm:$0xff]
    %v182 = vld [vmem:[#allocation6 + $0x48] sm:$0xff]
    %v183 = vld [vmem:[#allocation6 + $0x50] sm:$0xff]
    %v184 = vld [vmem:[#allocation6 + $0x58] sm:$0xff]
    %v185 = vld [vmem:[#allocation6 + $0x60] sm:$0xff]
    %v186 = vld [vmem:[#allocation6 + $0x68] sm:$0xff]
    %v187 = vld [vmem:[#allocation6 + $0x70] sm:$0xff]
    %v188 = vld [vmem:[#allocation6 + $0x78] sm:$0xff]
    %v189 = vld [vmem:[%s3 + $0x1] sm:$0x1]
    %v190 = vlaneseq
    %v191 = vshrl.u32 %v190, 7
    %v192 = vsub.s32 0, %v191
    %v193 = vrot.slane %v189, %v192
    %194 = vmatprep.subr.mxu0 0.0
    %195 = vmatpush1.msra.mxu0 %v173
    %196 = vmatprep.subr.mxu0 0.0
    %197 = vmatpush1.msra.mxu0 %v174
    %198 = vmatprep.subr.mxu0 0.0
    %199 = vmatpush1.msra.mxu0 %v175
    %200 = vmatprep.subr.mxu0 0.0
    %201 = vmatpush1.msra.mxu0 %v176
    %202 = vmatprep.subr.mxu0 0.0
    %203 = vmatpush1.msra.mxu0 %v177
    %204 = vmatprep.subr.mxu0 0.0
    %205 = vmatpush1.msra.mxu0 %v178
    %206 = vmatprep.subr.mxu0 0.0
    %207 = vmatpush1.msra.mxu0 %v179
    %208 = vmatprep.subr.mxu0 0.0
    %209 = vmatpush1.msra.mxu0 %v180
    %210 = vmatprep.subr.mxu0 0.0
    %211 = vmatpush1.msra.mxu0 %v181
    %212 = vmatprep.subr.mxu0 0.0
    %213 = vmatpush1.msra.mxu0 %v182
    %214 = vmatprep.subr.mxu0 0.0
    %215 = vmatpush1.msra.mxu0 %v183
    %216 = vmatprep.subr.mxu0 0.0
    %217 = vmatpush1.msra.mxu0 %v184
    %218 = vmatprep.subr.mxu0 0.0
    %219 = vmatpush1.msra.mxu0 %v185
    %220 = vmatprep.subr.mxu0 0.0
    %221 = vmatpush1.msra.mxu0 %v186
    %222 = vmatprep.subr.mxu0 0.0
    %223 = vmatpush1.msra.mxu0 %v187
    %224 = vmatprep.subr.mxu0 0.0
    %225 = vmatpush1.msra.mxu0 %v188
    %226 = vmatprep.subr.mxu0 0.0
    %227 = vmatpush1.msra.mxu0 0.0
    %228 = vmatprep.subr.mxu0 0.0
    %229 = vmatpush1.msra.mxu0 0.0
    %230 = vmatprep.subr.mxu0 0.0
    %231 = vmatpush1.msra.mxu0 0.0
    %232 = vmatprep.subr.mxu0 0.0
    %233 = vmatpush1.msra.mxu0 0.0
    %234 = vmatprep.subr.mxu0 0.0
    %235 = vmatpush1.msra.mxu0 0.0
    %236 = vmatprep.subr.mxu0 0.0
    %237 = vmatpush1.msra.mxu0 0.0
    %238 = vmatprep.subr.mxu0 0.0
    %239 = vmatpush1.msra.mxu0 0.0
    %240 = vmatprep.subr.mxu0 0.0
    %241 = vmatpush1.msra.mxu0 0.0
    %242 = vmatprep.subr.mxu0 0.0
    %243 = vmatpush1.msra.mxu0 0.0
    %244 = vmatprep.subr.mxu0 0.0
    %245 = vmatpush1.msra.mxu0 0.0
    %246 = vmatprep.subr.mxu0 0.0
    %247 = vmatpush1.msra.mxu0 0.0
    %248 = vmatprep.subr.mxu0 0.0
    %249 = vmatpush1.msra.mxu0 0.0
    %250 = vmatprep.subr.mxu0 0.0
    %251 = vmatpush1.msra.mxu0 0.0
    %252 = vmatprep.subr.mxu0 0.0
    %253 = vmatpush1.msra.mxu0 0.0
    %254 = vmatprep.subr.mxu0 0.0
    %255 = vmatpush1.msra.mxu0 0.0
    %256 = vmatprep.subr.mxu0 0.0
    %257 = vmatpush1.msra.mxu0 0.0
    %258 = vmatprep.mubr.f32.mxu0 0.0
    %259 = vmatmul.mubr.f32.gmra.mrb[0].mxu0 %v169
    %v260 = vpop.f32.mrb[0].mxu0
    %v261 = vadd.f32 %v193, %v260
    %v262 = vpop.f32.mrb[0].mxu0
    %263 = vmatprep.mubr.f32.mxu0 0.0
    %264 = vmatmul.mubr.f32.gmra.mrb[0].mxu0 %v170
    %v265 = vpop.f32.mrb[0].mxu0
    %v266 = vadd.f32 %v193, %v265
    %v267 = vpop.f32.mrb[0].mxu0
    %268 = vmatprep.mubr.f32.mxu0 0.0
    %269 = vmatmul.mubr.f32.gmra.mrb[0].mxu0 %v171
    %v270 = vpop.f32.mrb[0].mxu0
    %v271 = vadd.f32 %v193, %v270
    %v272 = vpop.f32.mrb[0].mxu0
    %273 = vmatprep.mubr.f32.mxu0 0.0
    %274 = vmatmul.mubr.f32.gmra.mrb[0].mxu0 %v172
    %v275 = vpop.f32.mrb[0].mxu0
    %v276 = vadd.f32 %v193, %v275
    %v277 = vpop.f32.mrb[0].mxu0
    %278 = vdwg.mxu0
    %v279 = vmax.f32 %v261, 0.0
    %v280 = vmax.f32 %v266, 0.0
    %v281 = vmax.f32 %v271, 0.0
    %v282 = vmax.f32 %v276, 0.0
    %v283 = vld [vmem:[#allocation6 + $0x80] sm:$0xff]
    %v284 = vld [vmem:[#allocation6 + $0x88] sm:$0xff]
    %v285 = vld [vmem:[#allocation6 + $0x90] sm:$0xff]
    %v286 = vld [vmem:[#allocation6 + $0x98] sm:$0xff]
    %v287 = vld [vmem:[#allocation6 + $0xa0] sm:$0xff]
    %v288 = vld [vmem:[#allocation6 + $0xa8] sm:$0xff]
    %v289 = vld [vmem:[#allocation6 + $0xb0] sm:$0xff]
    %v290 = vld [vmem:[#allocation6 + $0xb8] sm:$0xff]
    %v291 = vld [vmem:[#allocation6 + $0xc0] sm:$0xff]
    %v292 = vld [vmem:[#allocation6 + $0xc8] sm:$0xff]
    %v293 = vld [vmem:[#allocation6 + $0xd0] sm:$0xff]
    %v294 = vld [vmem:[#allocation6 + $0xd8] sm:$0xff]
    %v295 = vld [vmem:[#allocation6 + $0xe0] sm:$0xff]
    %v296 = vld [vmem:[#allocation6 + $0xe8] sm:$0xff]
    %v297 = vld [vmem:[#allocation6 + $0xf0] sm:$0xff]
    %v298 = vld [vmem:[#allocation6 + $0xf8] sm:$0xff]
    %v299 = vld [vmem:[%s3 + $0x2] sm:$0x1]
    %v300 = vlaneseq
    %v301 = vshrl.u32 %v300, 7
    %v302 = vsub.s32 0, %v301
    %v303 = vrot.slane %v299, %v302
    %304 = vmatprep.subr.mxu0 0.0
    %305 = vmatpush1.msra.mxu0 %v283
    %306 = vmatprep.subr.mxu0 0.0
    %307 = vmatpush1.msra.mxu0 %v284
    %308 = vmatprep.subr.mxu0 0.0
    %309 = vmatpush1.msra.mxu0 %v285
    %310 = vmatprep.subr.mxu0 0.0
    %311 = vmatpush1.msra.mxu0 %v286
    %312 = vmatprep.subr.mxu0 0.0
    %313 = vmatpush1.msra.mxu0 %v287
    %314 = vmatprep.subr.mxu0 0.0
    %315 = vmatpush1.msra.mxu0 %v288
    %316 = vmatprep.subr.mxu0 0.0
    %317 = vmatpush1.msra.mxu0 %v289
    %318 = vmatprep.subr.mxu0 0.0
    %319 = vmatpush1.msra.mxu0 %v290
    %320 = vmatprep.subr.mxu0 0.0
    %321 = vmatpush1.msra.mxu0 %v291
    %322 = vmatprep.subr.mxu0 0.0
    %323 = vmatpush1.msra.mxu0 %v292
    %324 = vmatprep.subr.mxu0 0.0
    %325 = vmatpush1.msra.mxu0 %v293
    %326 = vmatprep.subr.mxu0 0.0
    %327 = vmatpush1.msra.mxu0 %v294
    %328 = vmatprep.subr.mxu0 0.0
    %329 = vmatpush1.msra.mxu0 %v295
    %330 = vmatprep.subr.mxu0 0.0
    %331 = vmatpush1.msra.mxu0 %v296
    %332 = vmatprep.subr.mxu0 0.0
    %333 = vmatpush1.msra.mxu0 %v297
    %334 = vmatprep.subr.mxu0 0.0
    %335 = vmatpush1.msra.mxu0 %v298
    %336 = vmatprep.subr.mxu0 0.0
    %337 = vmatpush1.msra.mxu0 0.0
    %338 = vmatprep.subr.mxu0 0.0
    %339 = vmatpush1.msra.mxu0 0.0
    %340 = vmatprep.subr.mxu0 0.0
    %341 = vmatpush1.msra.mxu0 0.0
    %342 = vmatprep.subr.mxu0 0.0
    %343 = vmatpush1.msra.mxu0 0.0
    %344 = vmatprep.subr.mxu0 0.0
    %345 = vmatpush1.msra.mxu0 0.0
    %346 = vmatprep.subr.mxu0 0.0
    %347 = vmatpush1.msra.mxu0 0.0
    %348 = vmatprep.subr.mxu0 0.0
    %349 = vmatpush1.msra.mxu0 0.0
    %350 = vmatprep.subr.mxu0 0.0
    %351 = vmatpush1.msra.mxu0 0.0
    %352 = vmatprep.subr.mxu0 0.0
    %353 = vmatpush1.msra.mxu0 0.0
    %354 = vmatprep.subr.mxu0 0.0
    %355 = vmatpush1.msra.mxu0 0.0
    %356 = vmatprep.subr.mxu0 0.0
    %357 = vmatpush1.msra.mxu0 0.0
    %358 = vmatprep.subr.mxu0 0.0
    %359 = vmatpush1.msra.mxu0 0.0
    %360 = vmatprep.subr.mxu0 0.0
    %361 = vmatpush1.msra.mxu0 0.0
    %362 = vmatprep.subr.mxu0 0.0
    %363 = vmatpush1.msra.mxu0 0.0
    %364 = vmatprep.subr.mxu0 0.0
    %365 = vmatpush1.msra.mxu0 0.0
    %366 = vmatprep.subr.mxu0 0.0
    %367 = vmatpush1.msra.mxu0 0.0
    %368 = vmatprep.mubr.f32.mxu0 0.0
    %369 = vmatmul.mubr.f32.gmra.mrb[0].mxu0 %v279
    %v370 = vpop.f32.mrb[0].mxu0
    %v371 = vadd.f32 %v303, %v370
    %v372 = vpop.f32.mrb[0].mxu0
    %373 = vmatprep.mubr.f32.mxu0 0.0
    %374 = vmatmul.mubr.f32.gmra.mrb[0].mxu0 %v280
    %v375 = vpop.f32.mrb[0].mxu0
    %v376 = vadd.f32 %v303, %v375
    %v377 = vpop.f32.mrb[0].mxu0
    %378 = vmatprep.mubr.f32.mxu0 0.0
    %379 = vmatmul.mubr.f32.gmra.mrb[0].mxu0 %v281
    %v380 = vpop.f32.mrb[0].mxu0
    %v381 = vadd.f32 %v303, %v380
    %v382 = vpop.f32.mrb[0].mxu0
    %383 = vmatprep.mubr.f32.mxu0 0.0
    %384 = vmatmul.mubr.f32.gmra.mrb[0].mxu0 %v282
    %v385 = vpop.f32.mrb[0].mxu0
    %v386 = vadd.f32 %v303, %v385
    %v387 = vpop.f32.mrb[0].mxu0
    %388 = vdwg.mxu0
    %389 = vst [vmem:[%s4] sm:$0xff] %v371
    %390 = vst [vmem:[%s4 + $0x8] sm:$0xff] %v376
    %391 = vst [vmem:[%s4 + $0x10] sm:$0xff] %v381
    %392 = vst [vmem:[%s4 + $0x18] sm:$0xff] %v386
    // Predicated region
    $region30: #{nn_model_forward.1} parent=1 // pred_check
      _
    $region31: #{nn_model_forward.1} parent=1 // pred_check_branch
      %394 = sbr.rel (0) target = $region33
    $region32: #{nn_model_forward.1} parent=1 // pred_region
      _
    $region33: #{nn_model_forward.1} parent=1 // pred_fallthru
      _
    // Predicated region
    $region34: #{nn_model_forward.1} parent=1 // pred_check
      _
    $region35: #{nn_model_forward.1} parent=1 // pred_check_branch
      %396 = sbr.rel (0) target = $region37
    $region36: #{nn_model_forward.1} parent=1 // pred_region
      _
    $region37: #{nn_model_forward.1} parent=1 // pred_fallthru
      _
    %397 = vsyncpa [#allocation3], 1
    %398 = vsyncpa [#allocation5], 1

</llo_original>
